<compile_context>
chip_gen: v6e
topology: v6e:2x2x1
jax: 0.10.0
libtpu: 0.0.40
codegen_flags: <defaults>
</compile_context>

<pallas_src>
import functools

import jax
import jax.numpy as jnp
from jax.experimental import pallas as pl
from jax.experimental.pallas import tpu as pltpu


def _bprmf_kernel(u_sm, i_sm,                        # scalar prefetch (SMEM), (B,) int32 each
                  gu_hbm, gi_hbm,                    # embedding tables, HBM-resident
                  xui_ref, gamma_u_ref, gamma_i_ref,  # outputs (VMEM blocks)
                  gu_buf, gi_buf, sem):              # scratch: (TB,K) x2 + DMA sems
    TB, K = gu_buf.shape
    base = pl.program_id(0) * TB

    # Issue all row-gather DMAs for this batch block (2*TB small copies);
    # addresses come straight from the SMEM-resident index vectors.
    @pl.loop(0, TB)
    def _start(r):
        u_idx = u_sm[base + r]
        i_idx = i_sm[base + r]
        pltpu.make_async_copy(gu_hbm.at[u_idx], gu_buf.at[r], sem.at[0]).start()
        pltpu.make_async_copy(gi_hbm.at[i_idx], gi_buf.at[r], sem.at[1]).start()

    # Drain: wait descriptors only need (dst, sem, size), so a constant src
    # index is fine (same pattern as the paged-attention reference kernel).
    @pl.loop(0, TB)
    def _wait(r):
        pltpu.make_async_copy(gu_hbm.at[0], gu_buf.at[r], sem.at[0]).wait()
        pltpu.make_async_copy(gi_hbm.at[0], gi_buf.at[r], sem.at[1]).wait()

    gamma_u = gu_buf[...]                            # (TB, K) f32
    gamma_i = gi_buf[...]
    gamma_u_ref[...] = gamma_u
    gamma_i_ref[...] = gamma_i

    # xui[b] = sum_k gamma_u[b,k] * gamma_i[b,k], emitted lane-major as (1, TB)
    # via a ones-vector contraction (avoids a (TB,1) lane-sparse store).
    prod = gamma_u * gamma_i
    ones_row = jnp.ones((1, K), dtype=jnp.float32)
    xui_ref[...] = jax.lax.dot_general(
        ones_row, prod,
        dimension_numbers=(((1,), (1,)), ((), ())),
        preferred_element_type=jnp.float32)


@functools.partial(jax.jit, static_argnames=("block_b",))
def bprmf_forward(users, items, Gu, Gi, *, block_b=128):
    """Pallas implementation of BPRMFModel.forward((users, items))."""
    B = users.shape[0]
    U, K = Gu.shape
    I, _ = Gi.shape

    # Block over the batch; fall back to a single full-batch block when B is
    # not a multiple of 128 (keeps output block shapes (8,128)-legal).
    TB = block_b if (B % block_b == 0 and B >= block_b) else B
    grid = (B // TB,)

    # torch nn.Embedding would raise on out-of-range indices; clamp defensively
    # so the row DMA can never address out of bounds.
    users_i = jnp.clip(users.astype(jnp.int32), 0, U - 1)
    items_i = jnp.clip(items.astype(jnp.int32), 0, I - 1)

    out_shapes = (
        jax.ShapeDtypeStruct((1, B), jnp.float32),   # xui, lane-major row
        jax.ShapeDtypeStruct((B, K), jnp.float32),   # gamma_u
        jax.ShapeDtypeStruct((B, K), jnp.float32),   # gamma_i
    )

    grid_spec = pltpu.PrefetchScalarGridSpec(
        num_scalar_prefetch=2,          # users, items -> SMEM, fed to index maps / DMA addressing
        grid=grid,
        in_specs=[
            pl.BlockSpec(memory_space=pl.ANY),   # Gu stays in HBM (manual row gather)
            pl.BlockSpec(memory_space=pl.ANY),   # Gi stays in HBM
        ],
        out_specs=[
            pl.BlockSpec((1, TB), lambda b, u, i: (0, b)),
            pl.BlockSpec((TB, K), lambda b, u, i: (b, 0)),
            pl.BlockSpec((TB, K), lambda b, u, i: (b, 0)),
        ],
        scratch_shapes=[
            pltpu.VMEM((TB, K), jnp.float32),
            pltpu.VMEM((TB, K), jnp.float32),
            pltpu.SemaphoreType.DMA((2,)),
        ],
    )

    xui_row, gamma_u, gamma_i = pl.pallas_call(
        _bprmf_kernel,
        out_shape=out_shapes,
        grid_spec=grid_spec,
        compiler_params=pltpu.CompilerParams(
            dimension_semantics=("parallel",)),   # v7x: shard batch blocks across both TCs
    )(users_i, items_i, Gu, Gi)

    # torch.squeeze on (B, K) with B, K > 1 is a no-op; xui -> (B,)
    return xui_row.reshape(B), gamma_u, gamma_i


def xavier_uniform(key, shape):
    fan_in, fan_out = shape
    bound = (6.0 / (fan_in + fan_out)) ** 0.5
    return jax.random.uniform(key, shape, dtype=jnp.float32,
                              minval=-bound, maxval=bound)


if __name__ == "__main__":
    # Deterministic synthetic setup mirroring BPRMFModel.__init__ shapes.
    num_users, num_items, embed_k = 512, 768, 128
    batch = 256                                      # exercises 2 grid blocks of 128

    root = jax.random.PRNGKey(0)
    k_gu, k_gi, k_u, k_i = jax.random.split(root, 4)

    Gu = xavier_uniform(k_gu, (num_users, embed_k))   # nn.Embedding(num_users, K)
    Gi = xavier_uniform(k_gi, (num_items, embed_k))   # nn.Embedding(num_items, K)

    users = jax.random.randint(k_u, (batch,), 0, num_users, dtype=jnp.int32)
    items = jax.random.randint(k_i, (batch,), 0, num_items, dtype=jnp.int32)

    xui, gamma_u, gamma_i = bprmf_forward(users, items, Gu, Gi)
    jax.block_until_ready((xui, gamma_u, gamma_i))

    # Pure-JAX reference check of the forward semantics.
    ref_gu = Gu[users, :]
    ref_gi = Gi[items, :]
    ref_xui = jnp.sum(ref_gu * ref_gi, axis=1)
    assert xui.shape == (batch,)
    assert gamma_u.shape == (batch, embed_k) and gamma_i.shape == (batch, embed_k)
    assert jnp.allclose(gamma_u, ref_gu, atol=1e-6), "gamma_u mismatch"
    assert jnp.allclose(gamma_i, ref_gi, atol=1e-6), "gamma_i mismatch"
    assert jnp.allclose(xui, ref_xui, atol=1e-4, rtol=1e-4), "xui mismatch"

    print("KERNEL_OK")
</pallas_src>

<mosaic_0001>
module attributes {stable_mosaic.version = 11 : i64} {
  func.func @_bprmf_kernel(%arg0: i32, %arg1: memref<256xi32, #tpu.memory_space<smem>>, %arg2: memref<256xi32, #tpu.memory_space<smem>>, %arg3: memref<512x128xf32, #tpu.memory_space<any>>, %arg4: memref<768x128xf32, #tpu.memory_space<any>>, %arg5: memref<1x128xf32, #tpu.memory_space<vmem>>, %arg6: memref<128x128xf32, #tpu.memory_space<vmem>>, %arg7: memref<128x128xf32, #tpu.memory_space<vmem>>, %arg8: memref<128x128xf32, #tpu.memory_space<vmem>>, %arg9: memref<128x128xf32, #tpu.memory_space<vmem>>, %arg10: memref<2x!tpu.dma_semaphore, #tpu.memory_space<semaphore_mem>>) attributes {dimension_semantics = [#tpu.dimension_semantics<parallel>], iteration_bounds = array<i64: 2>, scalar_prefetch = 2 : i64, scratch_operands = 3 : i64, tpu.core_type = #tpu.core_type<tc>, window_params = [{}, {}, {transform_indices = @transform_2, window_bounds = array<i64: 1, 128>}, {transform_indices = @transform_3, window_bounds = array<i64: 128, 128>}, {transform_indices = @transform_4, window_bounds = array<i64: 128, 128>}]} {
    %c128_i32 = arith.constant 128 : i32
    %0 = arith.muli %arg0, %c128_i32 : i32
    %c0_i32 = arith.constant 0 : i32
    %c128_i32_0 = arith.constant 128 : i32
    %1 = arith.addi %c0_i32, %c128_i32_0 : i32
    %c1_i32 = arith.constant 1 : i32
    scf.for %arg11 = %c0_i32 to %1 step %c1_i32  : i32 {
      %c1_i32_16 = arith.constant 1 : i32
      %11 = arith.muli %arg11, %c1_i32_16 : i32
      %c0_i32_17 = arith.constant 0 : i32
      %12 = arith.addi %c0_i32_17, %11 : i32
      %13 = arith.addi %0, %12 : i32
      %14 = arith.index_cast %13 : i32 to index
      %15 = memref.load %arg1[%14] : memref<256xi32, #tpu.memory_space<smem>>
      %16 = arith.addi %0, %12 : i32
      %17 = arith.index_cast %16 : i32 to index
      %18 = memref.load %arg2[%17] : memref<256xi32, #tpu.memory_space<smem>>
      %c0_i32_18 = arith.constant 0 : i32
      %c0_i32_19 = arith.constant 0 : i32
      %19 = tpu.memref_slice %arg3[%15, %c0_i32_19] : memref<512x128xf32, #tpu.memory_space<any>> -> memref<1x128xf32, #tpu.memory_space<any>>
      %20 = tpu.memref_squeeze %19 : memref<1x128xf32, #tpu.memory_space<any>> -> memref<128xf32, #tpu.memory_space<any>>
      %c0_i32_20 = arith.constant 0 : i32
      %21 = tpu.memref_slice %arg8[%12, %c0_i32_20] : memref<128x128xf32, #tpu.memory_space<vmem>> -> memref<1x128xf32, #tpu.memory_space<vmem>>
      %22 = tpu.memref_squeeze %21 : memref<1x128xf32, #tpu.memory_space<vmem>> -> memref<128xf32, #tpu.memory_space<vmem>>
      %23 = tpu.memref_slice %arg10[%c0_i32_18] : memref<2x!tpu.dma_semaphore, #tpu.memory_space<semaphore_mem>> -> memref<1x!tpu.dma_semaphore, #tpu.memory_space<semaphore_mem>>
      %24 = tpu.memref_squeeze %23 : memref<1x!tpu.dma_semaphore, #tpu.memory_space<semaphore_mem>> -> memref<!tpu.dma_semaphore, #tpu.memory_space<semaphore_mem>>
      tpu.enqueue_dma source(%20 : memref<128xf32, #tpu.memory_space<any>>) target(%22 : memref<128xf32, #tpu.memory_space<vmem>>) target_semaphore(%24 : memref<!tpu.dma_semaphore, #tpu.memory_space<semaphore_mem>>)
      %c1_i32_21 = arith.constant 1 : i32
      %c0_i32_22 = arith.constant 0 : i32
      %25 = tpu.memref_slice %arg4[%18, %c0_i32_22] : memref<768x128xf32, #tpu.memory_space<any>> -> memref<1x128xf32, #tpu.memory_space<any>>
      %26 = tpu.memref_squeeze %25 : memref<1x128xf32, #tpu.memory_space<any>> -> memref<128xf32, #tpu.memory_space<any>>
      %c0_i32_23 = arith.constant 0 : i32
      %27 = tpu.memref_slice %arg9[%12, %c0_i32_23] : memref<128x128xf32, #tpu.memory_space<vmem>> -> memref<1x128xf32, #tpu.memory_space<vmem>>
      %28 = tpu.memref_squeeze %27 : memref<1x128xf32, #tpu.memory_space<vmem>> -> memref<128xf32, #tpu.memory_space<vmem>>
      %29 = tpu.memref_slice %arg10[%c1_i32_21] : memref<2x!tpu.dma_semaphore, #tpu.memory_space<semaphore_mem>> -> memref<1x!tpu.dma_semaphore, #tpu.memory_space<semaphore_mem>>
      %30 = tpu.memref_squeeze %29 : memref<1x!tpu.dma_semaphore, #tpu.memory_space<semaphore_mem>> -> memref<!tpu.dma_semaphore, #tpu.memory_space<semaphore_mem>>
      tpu.enqueue_dma source(%26 : memref<128xf32, #tpu.memory_space<any>>) target(%28 : memref<128xf32, #tpu.memory_space<vmem>>) target_semaphore(%30 : memref<!tpu.dma_semaphore, #tpu.memory_space<semaphore_mem>>)
    }
    %c128_i32_1 = arith.constant 128 : i32
    %c0_i32_2 = arith.constant 0 : i32
    %c128_i32_3 = arith.constant 128 : i32
    %2 = arith.addi %c0_i32_2, %c128_i32_3 : i32
    %c1_i32_4 = arith.constant 1 : i32
    scf.for %arg11 = %c0_i32_2 to %2 step %c1_i32_4  : i32 {
      %c1_i32_16 = arith.constant 1 : i32
      %11 = arith.muli %arg11, %c1_i32_16 : i32
      %c0_i32_17 = arith.constant 0 : i32
      %12 = arith.addi %c0_i32_17, %11 : i32
      %c0_i32_18 = arith.constant 0 : i32
      %c0_i32_19 = arith.constant 0 : i32
      %c0_i32_20 = arith.constant 0 : i32
      %13 = tpu.memref_slice %arg3[%c0_i32_18, %c0_i32_20] : memref<512x128xf32, #tpu.memory_space<any>> -> memref<1x128xf32, #tpu.memory_space<any>>
      %14 = tpu.memref_squeeze %13 : memref<1x128xf32, #tpu.memory_space<any>> -> memref<128xf32, #tpu.memory_space<any>>
      %c0_i32_21 = arith.constant 0 : i32
      %15 = tpu.memref_slice %arg8[%12, %c0_i32_21] : memref<128x128xf32, #tpu.memory_space<vmem>> -> memref<1x128xf32, #tpu.memory_space<vmem>>
      %16 = tpu.memref_squeeze %15 : memref<1x128xf32, #tpu.memory_space<vmem>> -> memref<128xf32, #tpu.memory_space<vmem>>
      %17 = tpu.memref_slice %arg10[%c0_i32_19] : memref<2x!tpu.dma_semaphore, #tpu.memory_space<semaphore_mem>> -> memref<1x!tpu.dma_semaphore, #tpu.memory_space<semaphore_mem>>
      %18 = tpu.memref_squeeze %17 : memref<1x!tpu.dma_semaphore, #tpu.memory_space<semaphore_mem>> -> memref<!tpu.dma_semaphore, #tpu.memory_space<semaphore_mem>>
      tpu.wait_dma2 semaphore(%18 : memref<!tpu.dma_semaphore, #tpu.memory_space<semaphore_mem>>) src(%14 : memref<128xf32, #tpu.memory_space<any>>) dst(%16 : memref<128xf32, #tpu.memory_space<vmem>>)
      %c0_i32_22 = arith.constant 0 : i32
      %c1_i32_23 = arith.constant 1 : i32
      %c0_i32_24 = arith.constant 0 : i32
      %19 = tpu.memref_slice %arg4[%c0_i32_22, %c0_i32_24] : memref<768x128xf32, #tpu.memory_space<any>> -> memref<1x128xf32, #tpu.memory_space<any>>
      %20 = tpu.memref_squeeze %19 : memref<1x128xf32, #tpu.memory_space<any>> -> memref<128xf32, #tpu.memory_space<any>>
      %c0_i32_25 = arith.constant 0 : i32
      %21 = tpu.memref_slice %arg9[%12, %c0_i32_25] : memref<128x128xf32, #tpu.memory_space<vmem>> -> memref<1x128xf32, #tpu.memory_space<vmem>>
      %22 = tpu.memref_squeeze %21 : memref<1x128xf32, #tpu.memory_space<vmem>> -> memref<128xf32, #tpu.memory_space<vmem>>
      %23 = tpu.memref_slice %arg10[%c1_i32_23] : memref<2x!tpu.dma_semaphore, #tpu.memory_space<semaphore_mem>> -> memref<1x!tpu.dma_semaphore, #tpu.memory_space<semaphore_mem>>
      %24 = tpu.memref_squeeze %23 : memref<1x!tpu.dma_semaphore, #tpu.memory_space<semaphore_mem>> -> memref<!tpu.dma_semaphore, #tpu.memory_space<semaphore_mem>>
      tpu.wait_dma2 semaphore(%24 : memref<!tpu.dma_semaphore, #tpu.memory_space<semaphore_mem>>) src(%20 : memref<128xf32, #tpu.memory_space<any>>) dst(%22 : memref<128xf32, #tpu.memory_space<vmem>>)
    }
    %c128_i32_5 = arith.constant 128 : i32
    %c0 = arith.constant 0 : index
    %c0_6 = arith.constant 0 : index
    %3 = vector.load %arg8[%c0, %c0_6] : memref<128x128xf32, #tpu.memory_space<vmem>>, vector<128x128xf32>
    %c0_7 = arith.constant 0 : index
    %c0_8 = arith.constant 0 : index
    %4 = vector.load %arg9[%c0_7, %c0_8] : memref<128x128xf32, #tpu.memory_space<vmem>>, vector<128x128xf32>
    %c0_9 = arith.constant 0 : index
    %c0_10 = arith.constant 0 : index
    %5 = vector.load %arg6[%c0_9, %c0_10] : memref<128x128xf32, #tpu.memory_space<vmem>>, vector<128x128xf32>
    tpu.vector_store %arg6[%c0_9, %c0_10], %3 {strides = array<i32>} : memref<128x128xf32, #tpu.memory_space<vmem>>, vector<128x128xf32>,
    %c0_11 = arith.constant 0 : index
    %c0_12 = arith.constant 0 : index
    %6 = vector.load %arg7[%c0_11, %c0_12] : memref<128x128xf32, #tpu.memory_space<vmem>>, vector<128x128xf32>
    tpu.vector_store %arg7[%c0_11, %c0_12], %4 {strides = array<i32>} : memref<128x128xf32, #tpu.memory_space<vmem>>, vector<128x128xf32>,
    %7 = arith.mulf %3, %4 : vector<128x128xf32>
    %cst = arith.constant 1.000000e+00 : f32
    %8 = vector.broadcast %cst : f32 to vector<1x128xf32>
    %cst_13 = arith.constant dense<0.000000e+00> : vector<1x128xf32>
    %9 = tpu.matmul %8, %7, %cst_13 {dimension_numbers = #tpu.dot_dimension_numbers<[1], [1], [0], [0], [0, 0, 1, 0], [], []>} : vector<1x128xf32>, vector<128x128xf32>, vector<1x128xf32> -> vector<1x128xf32>
    %c0_14 = arith.constant 0 : index
    %c0_15 = arith.constant 0 : index
    %10 = vector.load %arg5[%c0_14, %c0_15] : memref<1x128xf32, #tpu.memory_space<vmem>>, vector<1x128xf32>
    tpu.vector_store %arg5[%c0_14, %c0_15], %9 {strides = array<i32>} : memref<1x128xf32, #tpu.memory_space<vmem>>, vector<1x128xf32>,
    return
  }
  func.func @transform_2(%arg0: i32, %arg1: memref<256xi32, #tpu.memory_space<smem>>, %arg2: memref<256xi32, #tpu.memory_space<smem>>) -> (i32, i32) {
    %c0_i32 = arith.constant 0 : i32
    %c0_i32_0 = arith.constant 0 : i32
    return %c0_i32, %arg0 : i32, i32
  }
  func.func @transform_3(%arg0: i32, %arg1: memref<256xi32, #tpu.memory_space<smem>>, %arg2: memref<256xi32, #tpu.memory_space<smem>>) -> (i32, i32) {
    %c0_i32 = arith.constant 0 : i32
    %c0_i32_0 = arith.constant 0 : i32
    return %arg0, %c0_i32 : i32, i32
  }
  func.func @transform_4(%arg0: i32, %arg1: memref<256xi32, #tpu.memory_space<smem>>, %arg2: memref<256xi32, #tpu.memory_space<smem>>) -> (i32, i32) {
    %c0_i32 = arith.constant 0 : i32
    %c0_i32_0 = arith.constant 0 : i32
    return %arg0, %c0_i32 : i32, i32
  }
}

</mosaic_0001>

<llo_original>
// kernel: bprmf_forward.1
$region0: #{bprmf_forward.1}
  #allocation0 [shape = 'u32[]', space=smem, size = 0x4, offset = 0x4, fixed_abs, tag = 'smem constant byte address 0x4 - core index']
  #allocation1 [shape = 'u32[144,128]{1,0:T(1,128)}', space=vmem, size = 0x12000, scoped, tag = 'internal scratch']
  #allocation2 [shape = 'f32[128,128]{1,0:T(8,128)}', space=vmem, size = 0x10000, scoped, tag = 'scratch operand']
  #allocation3 [shape = 'f32[128,128]{1,0:T(8,128)}', space=vmem, size = 0x10000, scoped, tag = 'scratch operand']
  #allocation4 [shape = 's32[2]{0}', space=sflag, size = 0x8, scoped, tag = 'scratch operand']
  #allocation5 [shape = 's32[1]{0}', space=sflag, size = 0x4, scoped, tag = 'scoped memory for bprmf_forward.1']
  #allocation6 [shape = 'u8[1024]{0}', space=smem, size = 0x400, scoped, tag = 'prefetched SMEM operand 0']
  #allocation7 [shape = 'u8[1024]{0}', space=smem, size = 0x400, scoped, tag = 'prefetched SMEM operand 1']
  #allocation13 [shape = 's32[]', space=sflag, size = 0x4, offset = 0, fixed_abs, tag = 'sflag constant byte address 0x0 - dummy sync flag']
  #allocation14 [shape = 's32[]', space=sflag, size = 0x4, offset = 0, fixed_abs, tag = 'sflag constant byte address 0x0 - dummy sync flag']
  #allocation15 [shape = 'u32[]', space=smem, size = 0x4, offset = 0x44, fixed_abs, tag = 'smem constant byte address 0x44 - assertion arg 0']
  #allocation16 [shape = 'u32[]', space=smem, size = 0x4, offset = 0x48, fixed_abs, tag = 'smem constant byte address 0x48 - assertion arg 1']
  #allocation17 [shape = 's32[]', space=sflag, size = 0x4, offset = 0, fixed_abs, tag = 'sflag constant byte address 0x0 - dummy sync flag']
  #allocation18 [shape = 's32[]', space=sflag, size = 0x4, offset = 0, fixed_abs, tag = 'sflag constant byte address 0x0 - dummy sync flag']
  %s0 = inlined_call_operand.vmem [shape: s32[256], index: 0, kind: input, shape index: {}]
  %s1 = inlined_call_operand.vmem [shape: s32[256], index: 1, kind: input, shape index: {}]
  %s2 = inlined_call_operand.hbm [shape: f32[512,128], index: 2, kind: input, shape index: {}]
  %s3 = inlined_call_operand.hbm [shape: f32[768,128], index: 3, kind: input, shape index: {}]
  %s4 = inlined_call_operand.hbm [shape: f32[1,256], index: 4, kind: output, shape index: {0}]
  %s5 = inlined_call_operand.hbm [shape: f32[256,128], index: 5, kind: output, shape index: {1}]
  %s6 = inlined_call_operand.hbm [shape: f32[256,128], index: 6, kind: output, shape index: {2}]
  %7 = xla_tuple %s4, %s5, %s6
  %s8 = sld [smem:[#allocation0]]
  $region63: #{bprmf_forward.1} parent=0
    _
  %s10 = ssub.s32 1, %s8
  %s11 = scalar_select 0, %s10, %s8
  %s12 = sshll.u32 %s0, 4
  %s13 = int_to_ptr.vmem [resolvable:$true] %s12
  %15 = dma.vmem_to_smem %s13, 32, [#allocation6], [#allocation5]
  %s16 = sshll.u32 %s1, 4
  %s17 = int_to_ptr.vmem [resolvable:$true] %s16
  %19 = dma.vmem_to_smem %s17, 32, [#allocation7], [#allocation5]
  %20 = dma.done [#allocation5], 64
  %21 = sfence
  $region1: #{bprmf_forward.1} parent=0
    #allocation8 [shape = 'u8[1024]{0}', space=vmem, size = 0x400, scoped, tag = 'output window, operand 0']
    #allocation9 [shape = 's32[2]{0}', space=sflag, size = 0x8, scoped, tag = 'scoped memory for bprmf_forward.1']
    #allocation10 [shape = 'u8[131072]{0}', space=vmem, size = 0x20000, scoped, tag = 'output window, operand 1']
    #allocation11 [shape = 's32[2]{0}', space=sflag, size = 0x8, scoped, tag = 'scoped memory for bprmf_forward.1']
    #allocation12 [shape = 'u8[131072]{0}', space=vmem, size = 0x20000, scoped, tag = 'output window, operand 2']
    %22 = vsyncpa [#allocation9], 0
    %s23 = scalar_lea.sflag [#allocation9], 1
    %24 = vsyncpa %s23, 0
    %25 = vsyncpa [#allocation11], 0
    %s26 = scalar_lea.sflag [#allocation11], 1
    %27 = vsyncpa %s26, 0
    loop: start=0, step=1, limit=3
    $region2: #{bprmf_forward.1} parent=1 // loop_pre_header
      _
    $region3: #{bprmf_forward.1} parent=1 // loop_header
      %s29 = sphi 0, %s33
      %p30 = scmp.ge.s32.totalorder %s29, 3
      %s38 = sphi 0, %s40
      %s41 = sphi 0, %s38
      %s51 = sphi 0, %s41
      %s57 = sphi 0, %s59
      %s60 = sphi 0, %s57
      %s70 = sphi 0, %s60
      %s76 = sphi 0, %s78
      %s79 = sphi 0, %s76
      %s89 = sphi 0, %s79
    $region4: #{bprmf_forward.1} parent=1 // loop_header_branch
      %32 = sbr.rel (%p30) target = $region8
    $region5: #{bprmf_forward.1} parent=1 // loop_body
      %s34 = ssub.s32 %s29, 1
      %s35 = sadd.s32 %s29, 1
      %s36 = ssub.s32 %s29, %s35
      %p37 = scmp.eq.s32.totalorder %s36, 0
      %s39 = sadd.s32 %s38, 1
      %s40 = scalar_select %p37, %s38, %s39
      %p42 = pneg %p37
      %p43 = scmp.eq.s32.totalorder %s29, 1
      %p44 = por %p42, %p43
      %p45 = scmp.ne.s32.totalorder %s38, %s41
      %p46 = scmp.eq.s32.totalorder %s29, 0
      %p47 = por %p45, %p46
      %p48 = scmp.ne.s32.totalorder %s38, %s41
      %p49 = scmp.eq.s32.totalorder %s34, 1
      %p50 = por %p48, %p49
      %p52 = scmp.ne.s32.totalorder %s41, %s51
      %p53 = scmp.eq.s32.totalorder %s34, 0
      %p54 = por %p52, %p53
      %s55 = ssub.s32 %s29, %s35
      %p56 = scmp.eq.s32.totalorder %s55, 0
      %s58 = sadd.s32 %s57, 1
      %s59 = scalar_select %p56, %s57, %s58
      %p61 = pneg %p56
      %p62 = scmp.eq.s32.totalorder %s29, 1
      %p63 = por %p61, %p62
      %p64 = scmp.ne.s32.totalorder %s57, %s60
      %p65 = scmp.eq.s32.totalorder %s29, 0
      %p66 = por %p64, %p65
      %p67 = scmp.ne.s32.totalorder %s57, %s60
      %p68 = scmp.eq.s32.totalorder %s34, 1
      %p69 = por %p67, %p68
      %p71 = scmp.ne.s32.totalorder %s60, %s70
      %p72 = scmp.eq.s32.totalorder %s34, 0
      %p73 = por %p71, %p72
      %s74 = ssub.s32 %s29, %s35
      %p75 = scmp.eq.s32.totalorder %s74, 0
      %s77 = sadd.s32 %s76, 1
      %s78 = scalar_select %p75, %s76, %s77
      %p80 = pneg %p75
      %p81 = scmp.eq.s32.totalorder %s29, 1
      %p82 = por %p80, %p81
      %p83 = scmp.ne.s32.totalorder %s76, %s79
      %p84 = scmp.eq.s32.totalorder %s29, 0
      %p85 = por %p83, %p84
      %p86 = scmp.ne.s32.totalorder %s76, %s79
      %p87 = scmp.eq.s32.totalorder %s34, 1
      %p88 = por %p86, %p87
      %p90 = scmp.ne.s32.totalorder %s79, %s89
      %p91 = scmp.eq.s32.totalorder %s34, 0
      %p92 = por %p90, %p91
      %p93 = scmp.lt.s32.totalorder %s29, 2
      // Predicated region
      $region9: #{bprmf_forward.1} parent=5 // pred_check
        %p94 = pneg %p93
      $region10: #{bprmf_forward.1} parent=5 // pred_check_branch
        %96 = sbr.rel (%p94) target = $region12
      $region11: #{bprmf_forward.1} parent=5 // pred_region
        %p97 = pneg %p47
        %p98 = pneg %p44
        %s99 = sand.u32 %s38, 1
        %s100 = scalar_lea.sflag [#allocation9], %s99
        %s101 = sand.u32 %s38, 1
        %s102 = scalar_lea.vmem [#allocation8], %s101
        %p103 = pneg %p66
        %p104 = pneg %p63
        %s105 = sand.u32 %s29, 1
        %s106 = scalar_lea.sflag [#allocation11], %s105
        %s107 = sand.u32 %s57, 1
        %s108 = smul.addr %s107, 128
        %s109 = scalar_lea.vmem [#allocation10], %s108
        %p110 = pneg %p85
        %p111 = pneg %p82
        %s112 = sand.u32 %s29, 1
        %s113 = scalar_lea.sflag [#allocation11], %s112
        %s114 = sand.u32 %s76, 1
        %s115 = smul.addr %s114, 128
        %s116 = scalar_lea.vmem [#allocation12], %s115
        %s117 = smul.u32 16, %s29
        %s118 = smul.u32 16, %s29
        %s119 = smul.u32 %s29, 128
        loop: start=0, step=1, limit=128
        $region13: #{bprmf_forward.1} parent=11 // loop_pre_header
          _
        $region14: #{bprmf_forward.1} parent=11 // loop_header
          %s121 = sphi 0, %s125
          %p122 = scmp.ge.s32.totalorder %s121, 128
        $region15: #{bprmf_forward.1} parent=11 // loop_header_branch
          %124 = sbr.rel (%p122) target = $region19
        $region16: #{bprmf_forward.1} parent=11 // loop_body
          %s126 = sadd.s32 %s119, %s121
          %s127 = sld [smem:[#allocation6 + %s126]]
          %s128 = sld [smem:[#allocation7 + %s126]]
          %s129 = smul.addr %s127, 16
          %s130 = scalar_lea.hbm %s2, %s129
          %s131 = scalar_lea.vmem [#allocation2], %s121
          // Predicated region
          $region20: #{bprmf_forward.1} parent=16 // pred_check
            _
          $region21: #{bprmf_forward.1} parent=16 // pred_check_branch
            %133 = sbr.rel target = $region23
          $region22: #{bprmf_forward.1} parent=16 // pred_region
            %134 = sst [smem:[#allocation15]] [#allocation14]
            %135 = sst [smem:[#allocation16]] [#allocation13]
          $region23: #{bprmf_forward.1} parent=16 // pred_fallthru
            _
          %137 = shalt.err (0)
          %s139 = sshll.u32 %s131, 4
          %s140 = int_to_ptr.vmem [resolvable:$true] %s139
          %142 = dma.hbm_to_vmem [thread:$0]  %s130, 16, %s140, [#allocation4]
          %s143 = smul.addr %s128, 16
          %s144 = scalar_lea.hbm %s3, %s143
          %s145 = scalar_lea.vmem [#allocation3], %s121
          %s146 = scalar_lea.sflag [#allocation4], 1
          // Predicated region
          $region24: #{bprmf_forward.1} parent=16 // pred_check
            _
          $region25: #{bprmf_forward.1} parent=16 // pred_check_branch
            %148 = sbr.rel target = $region27
          $region26: #{bprmf_forward.1} parent=16 // pred_region
            %149 = sst [smem:[#allocation15]] [#allocation18]
            %150 = sst [smem:[#allocation16]] [#allocation17]
          $region27: #{bprmf_forward.1} parent=16 // pred_fallthru
            _
          %152 = shalt.err (0)
          %s154 = sshll.u32 %s145, 4
          %s155 = int_to_ptr.vmem [resolvable:$true] %s154
          %157 = dma.hbm_to_vmem [thread:$0]  %s144, 16, %s155, %s146
        $region17: #{bprmf_forward.1} parent=11 // loop_footer
          %s125 = sadd.s32 1, %s121
        $region18: #{bprmf_forward.1} parent=11 // loop_footer_branch
          %120 = sbr.rel target = $region14
        $region19: #{bprmf_forward.1} parent=11 // loop_exit
          _
        loop: start=0, step=1, limit=128
        $region28: #{bprmf_forward.1} parent=11 // loop_pre_header
          _
        $region29: #{bprmf_forward.1} parent=11 // loop_header
          %s159 = sphi 0, %s163
          %p160 = scmp.ge.s32.totalorder %s159, 128
        $region30: #{bprmf_forward.1} parent=11 // loop_header_branch
          %162 = sbr.rel (%p160) target = $region34
        $region31: #{bprmf_forward.1} parent=11 // loop_body
          %165 = dma.done [#allocation4], 16
          %s166 = scalar_lea.sflag [#allocation4], 1
          %168 = dma.done %s166, 16
        $region32: #{bprmf_forward.1} parent=11 // loop_footer
          %s163 = sadd.s32 1, %s159
        $region33: #{bprmf_forward.1} parent=11 // loop_footer_branch
          %158 = sbr.rel target = $region29
        $region34: #{bprmf_forward.1} parent=11 // loop_exit
          _
        %v169 = vld [vmem:[#allocation2] sm:$0xff]
        %v170 = vld [vmem:[#allocation2 + $0x8] sm:$0xff]
        %v171 = vld [vmem:[#allocation2 + $0x10] sm:$0xff]
        %v172 = vld [vmem:[#allocation2 + $0x18] sm:$0xff]
        %v173 = vld [vmem:[#allocation2 + $0x20] sm:$0xff]
        %v174 = vld [vmem:[#allocation2 + $0x28] sm:$0xff]
        %v175 = vld [vmem:[#allocation2 + $0x30] sm:$0xff]
        %v176 = vld [vmem:[#allocation2 + $0x38] sm:$0xff]
        %v177 = vld [vmem:[#allocation2 + $0x40] sm:$0xff]
        %v178 = vld [vmem:[#allocation2 + $0x48] sm:$0xff]
        %v179 = vld [vmem:[#allocation2 + $0x50] sm:$0xff]
        %v180 = vld [vmem:[#allocation2 + $0x58] sm:$0xff]
        %v181 = vld [vmem:[#allocation2 + $0x60] sm:$0xff]
        %v182 = vld [vmem:[#allocation2 + $0x68] sm:$0xff]
        %v183 = vld [vmem:[#allocation2 + $0x70] sm:$0xff]
        %v184 = vld [vmem:[#allocation2 + $0x78] sm:$0xff]
        %v185 = vld [vmem:[#allocation3] sm:$0xff]
        %v186 = vld [vmem:[#allocation3 + $0x8] sm:$0xff]
        %v187 = vld [vmem:[#allocation3 + $0x10] sm:$0xff]
        %v188 = vld [vmem:[#allocation3 + $0x18] sm:$0xff]
        %v189 = vld [vmem:[#allocation3 + $0x20] sm:$0xff]
        %v190 = vld [vmem:[#allocation3 + $0x28] sm:$0xff]
        %v191 = vld [vmem:[#allocation3 + $0x30] sm:$0xff]
        %v192 = vld [vmem:[#allocation3 + $0x38] sm:$0xff]
        %v193 = vld [vmem:[#allocation3 + $0x40] sm:$0xff]
        %v194 = vld [vmem:[#allocation3 + $0x48] sm:$0xff]
        %v195 = vld [vmem:[#allocation3 + $0x50] sm:$0xff]
        %v196 = vld [vmem:[#allocation3 + $0x58] sm:$0xff]
        %v197 = vld [vmem:[#allocation3 + $0x60] sm:$0xff]
        %v198 = vld [vmem:[#allocation3 + $0x68] sm:$0xff]
        %v199 = vld [vmem:[#allocation3 + $0x70] sm:$0xff]
        %v200 = vld [vmem:[#allocation3 + $0x78] sm:$0xff]
        %201 = vst [vmem:[%s109] sm:$0xff] %v169
        %202 = vst [vmem:[%s109 + $0x8] sm:$0xff] %v170
        %203 = vst [vmem:[%s109 + $0x10] sm:$0xff] %v171
        %204 = vst [vmem:[%s109 + $0x18] sm:$0xff] %v172
        %205 = vst [vmem:[%s109 + $0x20] sm:$0xff] %v173
        %206 = vst [vmem:[%s109 + $0x28] sm:$0xff] %v174
        %207 = vst [vmem:[%s109 + $0x30] sm:$0xff] %v175
        %208 = vst [vmem:[%s109 + $0x38] sm:$0xff] %v176
        %209 = vst [vmem:[%s109 + $0x40] sm:$0xff] %v177
        %210 = vst [vmem:[%s109 + $0x48] sm:$0xff] %v178
        %211 = vst [vmem:[%s109 + $0x50] sm:$0xff] %v179
        %212 = vst [vmem:[%s109 + $0x58] sm:$0xff] %v180
        %213 = vst [vmem:[%s109 + $0x60] sm:$0xff] %v181
        %214 = vst [vmem:[%s109 + $0x68] sm:$0xff] %v182
        %215 = vst [vmem:[%s109 + $0x70] sm:$0xff] %v183
        %216 = vst [vmem:[%s109 + $0x78] sm:$0xff] %v184
        %217 = vst [vmem:[%s116] sm:$0xff] %v185
        %218 = vst [vmem:[%s116 + $0x8] sm:$0xff] %v186
        %219 = vst [vmem:[%s116 + $0x10] sm:$0xff] %v187
        %220 = vst [vmem:[%s116 + $0x18] sm:$0xff] %v188
        %221 = vst [vmem:[%s116 + $0x20] sm:$0xff] %v189
        %222 = vst [vmem:[%s116 + $0x28] sm:$0xff] %v190
        %223 = vst [vmem:[%s116 + $0x30] sm:$0xff] %v191
        %224 = vst [vmem:[%s116 + $0x38] sm:$0xff] %v192
        %225 = vst [vmem:[%s116 + $0x40] sm:$0xff] %v193
        %226 = vst [vmem:[%s116 + $0x48] sm:$0xff] %v194
        %227 = vst [vmem:[%s116 + $0x50] sm:$0xff] %v195
        %228 = vst [vmem:[%s116 + $0x58] sm:$0xff] %v196
        %229 = vst [vmem:[%s116 + $0x60] sm:$0xff] %v197
        %230 = vst [vmem:[%s116 + $0x68] sm:$0xff] %v198
        %231 = vst [vmem:[%s116 + $0x70] sm:$0xff] %v199
        %232 = vst [vmem:[%s116 + $0x78] sm:$0xff] %v200
        %v233 = vmul.f32 %v169, %v185
        %v234 = vmul.f32 %v170, %v186
        %v235 = vmul.f32 %v171, %v187
        %v236 = vmul.f32 %v172, %v188
        %v237 = vmul.f32 %v173, %v189
        %v238 = vmul.f32 %v174, %v190
        %v239 = vmul.f32 %v175, %v191
        %v240 = vmul.f32 %v176, %v192
        %v241 = vmul.f32 %v177, %v193
        %v242 = vmul.f32 %v178, %v194
        %v243 = vmul.f32 %v179, %v195
        %v244 = vmul.f32 %v180, %v196
        %v245 = vmul.f32 %v181, %v197
        %v246 = vmul.f32 %v182, %v198
        %v247 = vmul.f32 %v183, %v199
        %v248 = vmul.f32 %v184, %v200
        %249 = vmatprep.subr.mxu0 0.0
        %250 = vmatpush1.xpose.msra.mxu0 %v248
        %251 = vmatprep.subr.mxu0 0.0
        %252 = vmatpush1.xpose.msra.mxu0 %v247
        %253 = vmatprep.subr.mxu0 0.0
        %254 = vmatpush1.xpose.msra.mxu0 %v246
        %255 = vmatprep.subr.mxu0 0.0
        %256 = vmatpush1.xpose.msra.mxu0 %v245
        %257 = vmatprep.subr.mxu0 0.0
        %258 = vmatpush1.xpose.msra.mxu0 %v244
        %259 = vmatprep.subr.mxu0 0.0
        %260 = vmatpush1.xpose.msra.mxu0 %v243
        %261 = vmatprep.subr.mxu0 0.0
        %262 = vmatpush1.xpose.msra.mxu0 %v242
        %263 = vmatprep.subr.mxu0 0.0
        %264 = vmatpush1.xpose.msra.mxu0 %v241
        %265 = vmatprep.subr.mxu0 0.0
        %266 = vmatpush1.xpose.msra.mxu0 %v240
        %267 = vmatprep.subr.mxu0 0.0
        %268 = vmatpush1.xpose.msra.mxu0 %v239
        %269 = vmatprep.subr.mxu0 0.0
        %270 = vmatpush1.xpose.msra.mxu0 %v238
        %271 = vmatprep.subr.mxu0 0.0
        %272 = vmatpush1.xpose.msra.mxu0 %v237
        %273 = vmatprep.subr.mxu0 0.0
        %274 = vmatpush1.xpose.msra.mxu0 %v236
        %275 = vmatprep.subr.mxu0 0.0
        %276 = vmatpush1.xpose.msra.mxu0 %v235
        %277 = vmatprep.subr.mxu0 0.0
        %278 = vmatpush1.xpose.msra.mxu0 %v234
        %279 = vmatprep.subr.mxu0 0.0
        %280 = vmatpush1.xpose.msra.mxu0 %v233
        %281 = vmatprep.subr.mxu0 0.0
        %282 = vmatpush2.xpose.msra.mxu0 0.0
        %283 = vmatprep.subr.mxu0 0.0
        %284 = vmatpush2.xpose.msra.mxu0 0.0
        %285 = vmatprep.subr.mxu0 0.0
        %286 = vmatpush2.xpose.msra.mxu0 0.0
        %287 = vmatprep.subr.mxu0 0.0
        %288 = vmatpush2.xpose.msra.mxu0 0.0
        %289 = vmatprep.subr.mxu0 0.0
        %290 = vmatpush2.xpose.msra.mxu0 0.0
        %291 = vmatprep.subr.mxu0 0.0
        %292 = vmatpush2.xpose.msra.mxu0 0.0
        %293 = vmatprep.subr.mxu0 0.0
        %294 = vmatpush2.xpose.msra.mxu0 0.0
        %295 = vmatprep.subr.mxu0 0.0
        %296 = vmatpush2.xpose.msra.mxu0 0.0
        %297 = vmatprep.subr.mxu0 0.0
        %298 = vmatpush2.xpose.msra.mxu0 0.0
        %299 = vmatprep.subr.mxu0 0.0
        %300 = vmatpush2.xpose.msra.mxu0 0.0
        %301 = vmatprep.subr.mxu0 0.0
        %302 = vmatpush2.xpose.msra.mxu0 0.0
        %303 = vmatprep.subr.mxu0 0.0
        %304 = vmatpush2.xpose.msra.mxu0 0.0
        %305 = vmatprep.subr.mxu0 0.0
        %306 = vmatpush2.xpose.msra.mxu0 0.0
        %307 = vmatprep.subr.mxu0 0.0
        %308 = vmatpush2.xpose.msra.mxu0 0.0
        %309 = vmatprep.subr.mxu0 0.0
        %310 = vmatpush2.xpose.msra.mxu0 0.0
        %311 = vmatprep.subr.mxu0 0.0
        %312 = vmatpush2.xpose.msra.mxu0 0.0
        %313 = vmatprep.mubr.f32.mxu0 0.0
        %314 = vmatmul.mubr.f32.gmra.mxu0 1.0
        %v315 = vpop.f32.mrf.mxu0
        %v316 = vadd.f32 0.0, %v315
        %v317 = vpop.f32.mrf.mxu0
        %318 = vdwg.mxu0
        %319 = vst [vmem:[%s102] sm:$0x1] %v316
        %s320 = sand.u32 %s38, 1
        %s321 = scalar_lea.sflag [#allocation9], %s320
        %s322 = sand.u32 %s38, 1
        %s323 = scalar_lea.vmem [#allocation8], %s322
        %s324 = sand.u32 %s29, 1
        %s325 = scalar_lea.sflag [#allocation11], %s324
        %s326 = sand.u32 %s57, 1
        %s327 = smul.addr %s326, 128
        %s328 = scalar_lea.vmem [#allocation10], %s327
        %s329 = sand.u32 %s29, 1
        %s330 = scalar_lea.sflag [#allocation11], %s329
        %s331 = sand.u32 %s76, 1
        %s332 = smul.addr %s331, 128
        %s333 = scalar_lea.vmem [#allocation12], %s332
        // Predicated region
        $region35: #{bprmf_forward.1} parent=11 // pred_check
          %p334 = pneg %p44
        $region36: #{bprmf_forward.1} parent=11 // pred_check_branch
          %336 = sbr.rel (%p334) target = $region38
        $region37: #{bprmf_forward.1} parent=11 // pred_region
          %s338 = ssub.s32 16, 16
          %339 = vsyncadd %s321, %s338
          %s340 = smul.addr %s29, 16
          %s341 = scalar_lea.hbm %s4, %s340
          %s343 = sshll.u32 %s323, 4
          %s344 = int_to_ptr.vmem [resolvable:$true] %s343
          %346 = dma.vmem_to_hbm [thread:$0]  %s344, 16, %s341, %s321
        $region38: #{bprmf_forward.1} parent=11 // pred_fallthru
          _
        // Predicated region
        $region39: #{bprmf_forward.1} parent=11 // pred_check
          %p347 = pneg %p63
        $region40: #{bprmf_forward.1} parent=11 // pred_check_branch
          %349 = sbr.rel (%p347) target = $region42
        $region41: #{bprmf_forward.1} parent=11 // pred_region
          %s350 = smul.u32 16, %s29
          %s352 = ssub.s32 2048, 2048
          %353 = vsyncadd %s325, %s352
          %s354 = smul.addr %s350, 128
          %s355 = scalar_lea.hbm %s5, %s354
          %s356 = sshll.u32 %s328, 4
          %s357 = int_to_ptr.vmem [resolvable:$true] %s356
          %362 = dma.vmem_to_hbm [thread:$0]  %s357, 2048, %s355, %s325, 128, 128, 8
        $region42: #{bprmf_forward.1} parent=11 // pred_fallthru
          _
        // Predicated region
        $region43: #{bprmf_forward.1} parent=11 // pred_check
          %p363 = pneg %p82
        $region44: #{bprmf_forward.1} parent=11 // pred_check_branch
          %365 = sbr.rel (%p363) target = $region46
        $region45: #{bprmf_forward.1} parent=11 // pred_region
          %s366 = smul.u32 16, %s29
          %s368 = ssub.s32 2048, 2048
          %369 = vsyncadd %s330, %s368
          %s370 = smul.addr %s366, 128
          %s371 = scalar_lea.hbm %s6, %s370
          %s372 = sshll.u32 %s333, 4
          %s373 = int_to_ptr.vmem [resolvable:$true] %s372
          %378 = dma.vmem_to_hbm [thread:$0]  %s373, 2048, %s371, %s330, 128, 128, 8
        $region46: #{bprmf_forward.1} parent=11 // pred_fallthru
          _
      $region12: #{bprmf_forward.1} parent=5 // pred_fallthru
        _
      %p379 = scmp.le.s32.totalorder 1, %s29
      // Predicated region
      $region47: #{bprmf_forward.1} parent=5 // pred_check
        %p380 = pneg %p379
      $region48: #{bprmf_forward.1} parent=5 // pred_check_branch
        %382 = sbr.rel (%p380) target = $region50
      $region49: #{bprmf_forward.1} parent=5 // pred_region
        %s383 = ssub.s32 %s29, 1
        // Predicated region
        $region51: #{bprmf_forward.1} parent=49 // pred_check
          %p384 = pneg %p50
        $region52: #{bprmf_forward.1} parent=49 // pred_check_branch
          %386 = sbr.rel (%p384) target = $region54
        $region53: #{bprmf_forward.1} parent=49 // pred_region
          %s387 = sand.u32 %s41, 1
          %s388 = scalar_lea.sflag [#allocation9], %s387
          %s389 = sand.u32 %s41, 1
          %s390 = scalar_lea.vmem [#allocation8], %s389
          %391 = dma.done %s388, 16
        $region54: #{bprmf_forward.1} parent=49 // pred_fallthru
          _
        // Predicated region
        $region55: #{bprmf_forward.1} parent=49 // pred_check
          %p392 = pneg %p69
        $region56: #{bprmf_forward.1} parent=49 // pred_check_branch
          %394 = sbr.rel (%p392) target = $region58
        $region57: #{bprmf_forward.1} parent=49 // pred_region
          %s395 = sand.u32 %s34, 1
          %s396 = scalar_lea.sflag [#allocation11], %s395
          %s397 = sand.u32 %s60, 1
          %s398 = smul.addr %s397, 128
          %s399 = scalar_lea.vmem [#allocation10], %s398
          %400 = dma.done %s396, 2048
        $region58: #{bprmf_forward.1} parent=49 // pred_fallthru
          _
        // Predicated region
        $region59: #{bprmf_forward.1} parent=49 // pred_check
          %p401 = pneg %p88
        $region60: #{bprmf_forward.1} parent=49 // pred_check_branch
          %403 = sbr.rel (%p401) target = $region62
        $region61: #{bprmf_forward.1} parent=49 // pred_region
          %s404 = sand.u32 %s34, 1
          %s405 = scalar_lea.sflag [#allocation11], %s404
          %s406 = sand.u32 %s79, 1
          %s407 = smul.addr %s406, 128
          %s408 = scalar_lea.vmem [#allocation12], %s407
          %409 = dma.done %s405, 2048
        $region62: #{bprmf_forward.1} parent=49 // pred_fallthru
          _
      $region50: #{bprmf_forward.1} parent=5 // pred_fallthru
        _
    $region6: #{bprmf_forward.1} parent=1 // loop_footer
      %s33 = sadd.s32 1, %s29
    $region7: #{bprmf_forward.1} parent=1 // loop_footer_branch
      %28 = sbr.rel target = $region3
    $region8: #{bprmf_forward.1} parent=1 // loop_exit
      _
    %410 = vsyncpa [#allocation9], 1
    %s411 = scalar_lea.sflag [#allocation9], 1
    %412 = vsyncpa %s411, 1
    %413 = vsyncpa [#allocation11], 1
    %s414 = scalar_lea.sflag [#allocation11], 1
    %415 = vsyncpa %s414, 1
  %416 = vsyncmov [#allocation4]
  %s417 = vpop.sfrf %416
  %p418 = scmp.eq.s32.totalorder %s417, 0
  %p419 = pneg %p418
  %421 = shalt.err (%p419)
  %s422 = scalar_lea.sflag [#allocation4], 1
  %423 = vsyncmov %s422
  %s424 = vpop.sfrf %423
  %p425 = scmp.eq.s32.totalorder %s424, 0
  %p426 = pneg %p425
  %428 = shalt.err (%p426)

</llo_original>
